<compile_context>
chip_gen: v6e
topology: v6e:2x2x1
jax: 0.10.0
libtpu: 0.0.40
codegen_flags: <defaults>
</compile_context>

<pallas_src>
import functools

import jax
import jax.numpy as jnp
from jax.experimental import pallas as pl
from jax.experimental.pallas import tpu as pltpu


def gru_kernel(lens_ref, xp_ref, whh_ref, bhn_ref, out_ref, hid_ref, h_scr, *,
               unroll):
    """One grid step = tt GRU timesteps for one batch block (time-major)."""
    c = pl.program_id(1)                      # time-chunk index (innermost, serial)
    tt, Bb, H = out_ref.shape

    @pl.when(c == 0)
    def _init():
        h_scr[...] = jnp.zeros_like(h_scr)

    # Loaded once per chunk; loop-invariant broadcasts hoisted out of the
    # unrolled inner loop.
    lens = lens_ref[...]                                        # (Bb, 1) int32
    whh = whh_ref[...]                                          # (H, 3H) [r|z|n]
    bhn_b = jnp.broadcast_to(bhn_ref[...], (Bb, H)).astype(jnp.float32)
    t0 = c * tt

    def step(i, h_prev):
        # Dense leading-axis load of this timestep's precomputed x-projection.
        xp_t = xp_ref[i].astype(jnp.float32)                    # (Bb, 3H)
        # Single fused recurrent MXU matmul per step (bf16 operands, f32 accum).
        hh = jnp.dot(h_prev.astype(whh.dtype), whh,
                     preferred_element_type=jnp.float32)        # (Bb, 3H)
        r = jax.nn.sigmoid(xp_t[:, 0:H] + hh[:, 0:H])
        z = jax.nn.sigmoid(xp_t[:, H:2 * H] + hh[:, H:2 * H])
        n = jnp.tanh(xp_t[:, 2 * H:] + r * (hh[:, 2 * H:] + bhn_b))
        h_new = (1.0 - z) * n + z * h_prev

        # Packed-sequence semantics: freeze h and zero output past each length.
        mask = (t0 + i) < lens                                  # (Bb, 1) bool
        out_ref[i] = jnp.where(mask, h_new, 0.0).astype(out_ref.dtype)
        return jnp.where(mask, h_new, h_prev)

    h_last = jax.lax.fori_loop(0, tt, step, h_scr[...], unroll=unroll)
    h_scr[...] = h_last                       # one VMEM store per chunk

    @pl.when(c == pl.num_programs(1) - 1)
    def _finalize():
        hid_ref[...] = h_last                 # final hidden written once per batch block


def gru_forward(xp_tm, lengths, w_hh_cat, b_hn, *, time_block=None,
                batch_block=None, unroll=None):
    """xp_tm: (T, B, 3H) time-major precomputed input-gate preactivations.

    Returns (out_tm (Tp, B, H), hid (B, H)).
    """
    T, B, G3 = xp_tm.shape
    H = G3 // 3
    tt = time_block if time_block is not None else min(T, 32)
    bb = batch_block if batch_block is not None else B
    assert B % bb == 0, "batch_block must divide batch"
    nbb = B // bb
    n_chunks = pl.cdiv(T, tt)
    Tp = n_chunks * tt
    if Tp != T:
        xp_tm = jnp.pad(xp_tm, ((0, Tp - T), (0, 0), (0, 0)))
    lens = lengths.astype(jnp.int32).reshape(B, 1)
    if unroll is None:
        unroll = min(tt, 8)

    out_dtype = xp_tm.dtype                   # bf16 on the fast path, f32 for exact mode
    xb = jnp.dtype(xp_tm.dtype).itemsize
    wb = jnp.dtype(w_hh_cat.dtype).itemsize
    # Double-buffered xp/out chunks + W_hh + small constants/scratch.
    needed = (2 * bb * tt * 3 * H * xb
              + 2 * bb * tt * H * jnp.dtype(out_dtype).itemsize
              + 2 * H * 3 * H * wb
              + 2 * (bb * 4 + H * 4)
              + 3 * bb * H * 4)
    vmem_limit = int(min(48 * 2 ** 20, max(32 * 2 ** 20, 2 * needed)))

    out_tm, hid = pl.pallas_call(
        functools.partial(gru_kernel, unroll=unroll),
        out_shape=(jax.ShapeDtypeStruct((Tp, B, H), out_dtype),
                   jax.ShapeDtypeStruct((B, H), jnp.float32)),
        grid_spec=pltpu.PrefetchScalarGridSpec(
            num_scalar_prefetch=0,
            grid=(nbb, n_chunks),                               # batch outer, time inner
            in_specs=[
                pl.BlockSpec((bb, 1), lambda b, c: (b, 0)),           # lengths
                pl.BlockSpec((tt, bb, 3 * H), lambda b, c: (c, b, 0)),  # xp chunk (time-major)
                pl.BlockSpec((H, 3 * H), lambda b, c: (0, 0)),        # fused W_hh (constant)
                pl.BlockSpec((1, H), lambda b, c: (0, 0)),            # b_hh[n] (constant)
            ],
            out_specs=[
                pl.BlockSpec((tt, bb, H), lambda b, c: (c, b, 0)),    # outputs (time-major)
                pl.BlockSpec((bb, H), lambda b, c: (b, 0)),           # final hidden
            ],
            scratch_shapes=[pltpu.VMEM((bb, H), jnp.float32)],        # h carry across chunks
        ),
        compiler_params=pltpu.CompilerParams(
            dimension_semantics=("parallel", "arbitrary"),            # batch parallel (v7x), time serial
            vmem_limit_bytes=vmem_limit),
    )(lens, xp_tm, w_hh_cat, b_hn)

    if Tp != T:
        out_tm = out_tm[:T]
    return out_tm, hid


def plain_encoder_forward(params, x, lengths, *, matmul_dtype=jnp.bfloat16,
                          time_block=None, batch_block=None, unroll=None):
    H = params["w_ih"].shape[-1]
    # Embedding lookup (glue, plain JAX).
    emb = jnp.take(params["embed"], x, axis=0).astype(jnp.float32)    # (B, T, H)
    # Dropout(p=0.2): inference-mode identity.
    # TODO(synk): train-mode dropout would need pltpu.prng_* masking on emb/xp.

    # Fuse the three gate weight matrices: (3, H, H) -> (H, 3H), gates [r|z|n].
    w_ih_cat = jnp.concatenate([params["w_ih"][0], params["w_ih"][1],
                                params["w_ih"][2]], axis=-1)
    w_hh_cat = jnp.concatenate([params["w_hh"][0], params["w_hh"][1],
                                params["w_hh"][2]], axis=-1)
    # Pre-fold biases: b_ih (all gates) plus b_hh for r,z go into the input
    # projection; b_hh[n] stays separate (sits inside r * (...) in the GRU).
    b_x = jnp.concatenate([params["b_ih"][0] + params["b_hh"][0],
                           params["b_ih"][1] + params["b_hh"][1],
                           params["b_ih"][2]], axis=-1)               # (1, 3H)
    b_hn = params["b_hh"][2]                                          # (1, H)

    # Hoisted input projection over all timesteps (off the serial path),
    # produced time-major so the kernel's per-step access is a dense
    # leading-axis load.  Matmul operands in matmul_dtype, f32 accumulation.
    emb_tm = jnp.transpose(emb, (1, 0, 2))                            # (T, B, H)
    xp_tm = jnp.einsum("tbh,hg->tbg",
                       emb_tm.astype(matmul_dtype),
                       w_ih_cat.astype(matmul_dtype),
                       preferred_element_type=jnp.float32) + b_x
    xp_tm = xp_tm.astype(matmul_dtype)                                # (T, B, 3H)

    out_tm, hid = gru_forward(xp_tm, lengths, w_hh_cat.astype(matmul_dtype),
                              b_hn, time_block=time_block,
                              batch_block=batch_block, unroll=unroll)
    out = jnp.transpose(out_tm, (1, 0, 2))                            # (B, T, H)
    return out, hid[None]                                             # hid[[-1]]: (1, B, H)


def reference_forward(params, x, lengths):
    """Pure-JAX reference reproducing the PyTorch packed-GRU semantics."""
    emb = jnp.take(params["embed"], x, axis=0).astype(jnp.float32)
    B, T, H = emb.shape
    h = jnp.zeros((B, H), jnp.float32)
    outs = []
    for t in range(T):
        x_t = emb[:, t]
        r = jax.nn.sigmoid(x_t @ params["w_ih"][0] + params["b_ih"][0]
                           + h @ params["w_hh"][0] + params["b_hh"][0])
        z = jax.nn.sigmoid(x_t @ params["w_ih"][1] + params["b_ih"][1]
                           + h @ params["w_hh"][1] + params["b_hh"][1])
        n = jnp.tanh(x_t @ params["w_ih"][2] + params["b_ih"][2]
                     + r * (h @ params["w_hh"][2] + params["b_hh"][2]))
        h_new = (1.0 - z) * n + z * h
        mask = (t < lengths)[:, None]
        outs.append(jnp.where(mask, h_new, 0.0))
        h = jnp.where(mask, h_new, h)
    return jnp.stack(outs, axis=1), h[None]


def init_params(key, vocab_size, hidden_size):
    k = 1.0 / jnp.sqrt(jnp.float32(hidden_size))
    keys = jax.random.split(key, 5)
    embed = jax.random.normal(keys[0], (vocab_size, hidden_size), jnp.float32)
    w_ih = jax.random.uniform(keys[1], (3, hidden_size, hidden_size),
                              jnp.float32, -k, k)
    w_hh = jax.random.uniform(keys[2], (3, hidden_size, hidden_size),
                              jnp.float32, -k, k)
    b_ih = jax.random.uniform(keys[3], (3, 1, hidden_size), jnp.float32, -k, k)
    b_hh = jax.random.uniform(keys[4], (3, 1, hidden_size), jnp.float32, -k, k)
    return {"embed": embed, "w_ih": w_ih, "w_hh": w_hh,
            "b_ih": b_ih, "b_hh": b_hh}


if __name__ == "__main__":
    vocab_size, hidden_size = 50, 32
    batch, seq = 4, 9                       # seq=9 with tt=4 exercises the padded-Tp path

    key = jax.random.PRNGKey(0)
    pkey, xkey = jax.random.split(key)
    params = init_params(pkey, vocab_size, hidden_size)

    x = jax.random.randint(xkey, (batch, seq), 0, vocab_size, dtype=jnp.int32)
    lengths = jnp.array([9, 5, 7, 3], dtype=jnp.int32)

    out_ref, hid_ref = reference_forward(params, x, lengths)
    max_len = int(jnp.max(lengths))         # pad_packed_sequence truncates to max(lengths)
    out_ref = out_ref[:, :max_len]

    # 1) f32 compute path: exactness check against the reference.
    out32, hid32 = plain_encoder_forward(params, x, lengths,
                                         matmul_dtype=jnp.float32, time_block=4)
    out32 = jax.block_until_ready(out32)[:, :max_len]
    hid32 = jax.block_until_ready(hid32)
    assert out32.shape == (batch, max_len, hidden_size)
    assert hid32.shape == (1, batch, hidden_size)
    assert jnp.allclose(out32, out_ref, atol=1e-4, rtol=1e-4)
    assert jnp.allclose(hid32, hid_ref, atol=1e-4, rtol=1e-4)

    # 2) bf16-operand fast path (production config): looser tolerance.
    out16, hid16 = plain_encoder_forward(params, x, lengths,
                                         matmul_dtype=jnp.bfloat16, time_block=4)
    out16 = jax.block_until_ready(out16)[:, :max_len]
    hid16 = jax.block_until_ready(hid16)
    assert out16.shape == (batch, max_len, hidden_size)
    assert hid16.shape == (1, batch, hidden_size)
    assert jnp.allclose(out16.astype(jnp.float32), out_ref, atol=5e-2, rtol=5e-2)
    assert jnp.allclose(hid16, hid_ref, atol=5e-2, rtol=5e-2)

    print("KERNEL_OK")
</pallas_src>

<mosaic_0001>
module attributes {stable_mosaic.version = 11 : i64} {
  func.func @gru_kernel(%arg0: i32, %arg1: i32, %arg2: memref<4x1xi32, #tpu.memory_space<vmem>>, %arg3: memref<4x4x96xf32, #tpu.memory_space<vmem>>, %arg4: memref<32x96xf32, #tpu.memory_space<vmem>>, %arg5: memref<1x32xf32, #tpu.memory_space<vmem>>, %arg6: memref<4x4x32xf32, #tpu.memory_space<vmem>>, %arg7: memref<4x32xf32, #tpu.memory_space<vmem>>, %arg8: memref<4x32xf32, #tpu.memory_space<vmem>>) attributes {dimension_semantics = [#tpu.dimension_semantics<parallel>, #tpu.dimension_semantics<arbitrary>], iteration_bounds = array<i64: 1, 3>, scalar_prefetch = 0 : i64, scratch_operands = 1 : i64, tpu.core_type = #tpu.core_type<tc>, window_params = [{transform_indices = @transform_0, window_bounds = array<i64: 4, 1>}, {transform_indices = @transform_1, window_bounds = array<i64: 4, 4, 96>}, {pipeline_mode = #tpu.pipeline_mode<synchronous>, transform_indices = @transform_2, window_bounds = array<i64: 32, 96>}, {pipeline_mode = #tpu.pipeline_mode<synchronous>, transform_indices = @transform_3, window_bounds = array<i64: 1, 32>}, {transform_indices = @transform_4, window_bounds = array<i64: 4, 4, 32>}, {transform_indices = @transform_5, window_bounds = array<i64: 4, 32>}]} {
    %c0_i32 = arith.constant 0 : i32
    %0 = arith.cmpi eq, %arg1, %c0_i32 : i32
    %1 = arith.extui %0 : i1 to i32
    %c0_i32_0 = arith.constant 0 : i32
    %2 = arith.cmpi ne, %1, %c0_i32_0 : i32
    scf.if %2 {
      %cst_49 = arith.constant 0.000000e+00 : f32
      %194 = vector.broadcast %cst_49 : f32 to vector<4x32xf32>
      %c0_50 = arith.constant 0 : index
      %c0_51 = arith.constant 0 : index
      %195 = vector.load %arg8[%c0_50, %c0_51] : memref<4x32xf32, #tpu.memory_space<vmem>>, vector<4x32xf32>
      tpu.vector_store %arg8[%c0_50, %c0_51], %194 {strides = array<i32>} : memref<4x32xf32, #tpu.memory_space<vmem>>, vector<4x32xf32>,
    } else {
    }
    %c0 = arith.constant 0 : index
    %c0_1 = arith.constant 0 : index
    %3 = vector.load %arg2[%c0, %c0_1] : memref<4x1xi32, #tpu.memory_space<vmem>>, vector<4x1xi32>
    %c0_2 = arith.constant 0 : index
    %c0_3 = arith.constant 0 : index
    %4 = vector.load %arg4[%c0_2, %c0_3] : memref<32x96xf32, #tpu.memory_space<vmem>>, vector<32x96xf32>
    %c0_4 = arith.constant 0 : index
    %c0_5 = arith.constant 0 : index
    %5 = vector.load %arg5[%c0_4, %c0_5] : memref<1x32xf32, #tpu.memory_space<vmem>>, vector<1x32xf32>
    %6 = vector.shape_cast %5 : vector<1x32xf32> to vector<1x32xf32>
    %7 = vector.broadcast %6 : vector<1x32xf32> to vector<4x32xf32>
    %c4_i32 = arith.constant 4 : i32
    %8 = arith.muli %arg1, %c4_i32 : i32
    %c0_6 = arith.constant 0 : index
    %c0_7 = arith.constant 0 : index
    %9 = vector.load %arg8[%c0_6, %c0_7] : memref<4x32xf32, #tpu.memory_space<vmem>>, vector<4x32xf32>
    %c0_i32_8 = arith.constant 0 : i32
    %10 = arith.index_cast %c0_i32_8 : i32 to index
    %c0_9 = arith.constant 0 : index
    %c0_10 = arith.constant 0 : index
    %11 = vector.load %arg3[%10, %c0_9, %c0_10] : memref<4x4x96xf32, #tpu.memory_space<vmem>>, vector<1x4x96xf32>
    %12 = vector.shape_cast %11 : vector<1x4x96xf32> to vector<4x96xf32>
    %cst = arith.constant dense<0.000000e+00> : vector<4x96xf32>
    %13 = tpu.matmul %9, %4, %cst {dimension_numbers = #tpu.dot_dimension_numbers<[1], [0], [0], [1], [0, 0, 1, 1], [], []>} : vector<4x32xf32>, vector<32x96xf32>, vector<4x96xf32> -> vector<4x96xf32>
    %14 = vector.extract_strided_slice %12 {offsets = [0, 0], sizes = [4, 32], strides = [1, 1]} : vector<4x96xf32> to vector<4x32xf32>
    %15 = vector.extract_strided_slice %13 {offsets = [0, 0], sizes = [4, 32], strides = [1, 1]} : vector<4x96xf32> to vector<4x32xf32>
    %16 = arith.addf %14, %15 : vector<4x32xf32>
    %17 = arith.negf %16 : vector<4x32xf32>
    %18 = math.exp %17 : vector<4x32xf32>
    %cst_11 = arith.constant 1.000000e+00 : f32
    %19 = vector.broadcast %cst_11 : f32 to vector<4x32xf32>
    %20 = arith.addf %19, %18 : vector<4x32xf32>
    %21 = arith.divf %19, %20 : vector<4x32xf32>
    %22 = vector.extract_strided_slice %12 {offsets = [0, 32], sizes = [4, 32], strides = [1, 1]} : vector<4x96xf32> to vector<4x32xf32>
    %23 = vector.extract_strided_slice %13 {offsets = [0, 32], sizes = [4, 32], strides = [1, 1]} : vector<4x96xf32> to vector<4x32xf32>
    %24 = arith.addf %22, %23 : vector<4x32xf32>
    %25 = arith.negf %24 : vector<4x32xf32>
    %26 = math.exp %25 : vector<4x32xf32>
    %cst_12 = arith.constant 1.000000e+00 : f32
    %27 = vector.broadcast %cst_12 : f32 to vector<4x32xf32>
    %28 = arith.addf %27, %26 : vector<4x32xf32>
    %29 = arith.divf %27, %28 : vector<4x32xf32>
    %30 = vector.extract_strided_slice %12 {offsets = [0, 64], sizes = [4, 32], strides = [1, 1]} : vector<4x96xf32> to vector<4x32xf32>
    %31 = vector.extract_strided_slice %13 {offsets = [0, 64], sizes = [4, 32], strides = [1, 1]} : vector<4x96xf32> to vector<4x32xf32>
    %32 = arith.addf %31, %7 : vector<4x32xf32>
    %33 = arith.mulf %21, %32 : vector<4x32xf32>
    %34 = arith.addf %30, %33 : vector<4x32xf32>
    %35 = math.tanh %34 : vector<4x32xf32>
    %cst_13 = arith.constant 1.000000e+00 : f32
    %36 = vector.broadcast %cst_13 : f32 to vector<4x32xf32>
    %37 = arith.subf %36, %29 : vector<4x32xf32>
    %38 = arith.mulf %37, %35 : vector<4x32xf32>
    %39 = arith.mulf %29, %9 : vector<4x32xf32>
    %40 = arith.addf %38, %39 : vector<4x32xf32>
    %41 = arith.addi %8, %c0_i32_8 : i32
    %42 = vector.broadcast %41 : i32 to vector<4x1xi32>
    %43 = arith.cmpi slt, %42, %3 : vector<4x1xi32>
    %cst_14 = arith.constant 0.000000e+00 : f32
    %44 = vector.shape_cast %43 : vector<4x1xi1> to vector<4x1xi1>
    %45 = vector.broadcast %44 : vector<4x1xi1> to vector<4x32xi1>
    %46 = vector.broadcast %cst_14 : f32 to vector<4x32xf32>
    %47 = arith.select %45, %40, %46 : vector<4x32xi1>, vector<4x32xf32>
    %48 = arith.index_cast %c0_i32_8 : i32 to index
    %c0_15 = arith.constant 0 : index
    %c0_16 = arith.constant 0 : index
    %49 = vector.load %arg6[%48, %c0_15, %c0_16] : memref<4x4x32xf32, #tpu.memory_space<vmem>>, vector<1x4x32xf32>
    %50 = vector.shape_cast %49 : vector<1x4x32xf32> to vector<4x32xf32>
    %51 = vector.shape_cast %47 : vector<4x32xf32> to vector<1x4x32xf32>
    tpu.vector_store %arg6[%48, %c0_15, %c0_16], %51 {strides = array<i32>} : memref<4x4x32xf32, #tpu.memory_space<vmem>>, vector<1x4x32xf32>,
    %52 = vector.shape_cast %43 : vector<4x1xi1> to vector<4x1xi1>
    %53 = vector.broadcast %52 : vector<4x1xi1> to vector<4x32xi1>
    %54 = arith.select %53, %40, %9 : vector<4x32xi1>, vector<4x32xf32>
    %c1_i32 = arith.constant 1 : i32
    %55 = arith.index_cast %c1_i32 : i32 to index
    %c0_17 = arith.constant 0 : index
    %c0_18 = arith.constant 0 : index
    %56 = vector.load %arg3[%55, %c0_17, %c0_18] : memref<4x4x96xf32, #tpu.memory_space<vmem>>, vector<1x4x96xf32>
    %57 = vector.shape_cast %56 : vector<1x4x96xf32> to vector<4x96xf32>
    %cst_19 = arith.constant dense<0.000000e+00> : vector<4x96xf32>
    %58 = tpu.matmul %54, %4, %cst_19 {dimension_numbers = #tpu.dot_dimension_numbers<[1], [0], [0], [1], [0, 0, 1, 1], [], []>} : vector<4x32xf32>, vector<32x96xf32>, vector<4x96xf32> -> vector<4x96xf32>
    %59 = vector.extract_strided_slice %57 {offsets = [0, 0], sizes = [4, 32], strides = [1, 1]} : vector<4x96xf32> to vector<4x32xf32>
    %60 = vector.extract_strided_slice %58 {offsets = [0, 0], sizes = [4, 32], strides = [1, 1]} : vector<4x96xf32> to vector<4x32xf32>
    %61 = arith.addf %59, %60 : vector<4x32xf32>
    %62 = arith.negf %61 : vector<4x32xf32>
    %63 = math.exp %62 : vector<4x32xf32>
    %cst_20 = arith.constant 1.000000e+00 : f32
    %64 = vector.broadcast %cst_20 : f32 to vector<4x32xf32>
    %65 = arith.addf %64, %63 : vector<4x32xf32>
    %66 = arith.divf %64, %65 : vector<4x32xf32>
    %67 = vector.extract_strided_slice %57 {offsets = [0, 32], sizes = [4, 32], strides = [1, 1]} : vector<4x96xf32> to vector<4x32xf32>
    %68 = vector.extract_strided_slice %58 {offsets = [0, 32], sizes = [4, 32], strides = [1, 1]} : vector<4x96xf32> to vector<4x32xf32>
    %69 = arith.addf %67, %68 : vector<4x32xf32>
    %70 = arith.negf %69 : vector<4x32xf32>
    %71 = math.exp %70 : vector<4x32xf32>
    %cst_21 = arith.constant 1.000000e+00 : f32
    %72 = vector.broadcast %cst_21 : f32 to vector<4x32xf32>
    %73 = arith.addf %72, %71 : vector<4x32xf32>
    %74 = arith.divf %72, %73 : vector<4x32xf32>
    %75 = vector.extract_strided_slice %57 {offsets = [0, 64], sizes = [4, 32], strides = [1, 1]} : vector<4x96xf32> to vector<4x32xf32>
    %76 = vector.extract_strided_slice %58 {offsets = [0, 64], sizes = [4, 32], strides = [1, 1]} : vector<4x96xf32> to vector<4x32xf32>
    %77 = arith.addf %76, %7 : vector<4x32xf32>
    %78 = arith.mulf %66, %77 : vector<4x32xf32>
    %79 = arith.addf %75, %78 : vector<4x32xf32>
    %80 = math.tanh %79 : vector<4x32xf32>
    %cst_22 = arith.constant 1.000000e+00 : f32
    %81 = vector.broadcast %cst_22 : f32 to vector<4x32xf32>
    %82 = arith.subf %81, %74 : vector<4x32xf32>
    %83 = arith.mulf %82, %80 : vector<4x32xf32>
    %84 = arith.mulf %74, %54 : vector<4x32xf32>
    %85 = arith.addf %83, %84 : vector<4x32xf32>
    %86 = arith.addi %8, %c1_i32 : i32
    %87 = vector.broadcast %86 : i32 to vector<4x1xi32>
    %88 = arith.cmpi slt, %87, %3 : vector<4x1xi32>
    %cst_23 = arith.constant 0.000000e+00 : f32
    %89 = vector.shape_cast %88 : vector<4x1xi1> to vector<4x1xi1>
    %90 = vector.broadcast %89 : vector<4x1xi1> to vector<4x32xi1>
    %91 = vector.broadcast %cst_23 : f32 to vector<4x32xf32>
    %92 = arith.select %90, %85, %91 : vector<4x32xi1>, vector<4x32xf32>
    %93 = arith.index_cast %c1_i32 : i32 to index
    %c0_24 = arith.constant 0 : index
    %c0_25 = arith.constant 0 : index
    %94 = vector.load %arg6[%93, %c0_24, %c0_25] : memref<4x4x32xf32, #tpu.memory_space<vmem>>, vector<1x4x32xf32>
    %95 = vector.shape_cast %94 : vector<1x4x32xf32> to vector<4x32xf32>
    %96 = vector.shape_cast %92 : vector<4x32xf32> to vector<1x4x32xf32>
    tpu.vector_store %arg6[%93, %c0_24, %c0_25], %96 {strides = array<i32>} : memref<4x4x32xf32, #tpu.memory_space<vmem>>, vector<1x4x32xf32>,
    %97 = vector.shape_cast %88 : vector<4x1xi1> to vector<4x1xi1>
    %98 = vector.broadcast %97 : vector<4x1xi1> to vector<4x32xi1>
    %99 = arith.select %98, %85, %54 : vector<4x32xi1>, vector<4x32xf32>
    %c2_i32 = arith.constant 2 : i32
    %100 = arith.index_cast %c2_i32 : i32 to index
    %c0_26 = arith.constant 0 : index
    %c0_27 = arith.constant 0 : index
    %101 = vector.load %arg3[%100, %c0_26, %c0_27] : memref<4x4x96xf32, #tpu.memory_space<vmem>>, vector<1x4x96xf32>
    %102 = vector.shape_cast %101 : vector<1x4x96xf32> to vector<4x96xf32>
    %cst_28 = arith.constant dense<0.000000e+00> : vector<4x96xf32>
    %103 = tpu.matmul %99, %4, %cst_28 {dimension_numbers = #tpu.dot_dimension_numbers<[1], [0], [0], [1], [0, 0, 1, 1], [], []>} : vector<4x32xf32>, vector<32x96xf32>, vector<4x96xf32> -> vector<4x96xf32>
    %104 = vector.extract_strided_slice %102 {offsets = [0, 0], sizes = [4, 32], strides = [1, 1]} : vector<4x96xf32> to vector<4x32xf32>
    %105 = vector.extract_strided_slice %103 {offsets = [0, 0], sizes = [4, 32], strides = [1, 1]} : vector<4x96xf32> to vector<4x32xf32>
    %106 = arith.addf %104, %105 : vector<4x32xf32>
    %107 = arith.negf %106 : vector<4x32xf32>
    %108 = math.exp %107 : vector<4x32xf32>
    %cst_29 = arith.constant 1.000000e+00 : f32
    %109 = vector.broadcast %cst_29 : f32 to vector<4x32xf32>
    %110 = arith.addf %109, %108 : vector<4x32xf32>
    %111 = arith.divf %109, %110 : vector<4x32xf32>
    %112 = vector.extract_strided_slice %102 {offsets = [0, 32], sizes = [4, 32], strides = [1, 1]} : vector<4x96xf32> to vector<4x32xf32>
    %113 = vector.extract_strided_slice %103 {offsets = [0, 32], sizes = [4, 32], strides = [1, 1]} : vector<4x96xf32> to vector<4x32xf32>
    %114 = arith.addf %112, %113 : vector<4x32xf32>
    %115 = arith.negf %114 : vector<4x32xf32>
    %116 = math.exp %115 : vector<4x32xf32>
    %cst_30 = arith.constant 1.000000e+00 : f32
    %117 = vector.broadcast %cst_30 : f32 to vector<4x32xf32>
    %118 = arith.addf %117, %116 : vector<4x32xf32>
    %119 = arith.divf %117, %118 : vector<4x32xf32>
    %120 = vector.extract_strided_slice %102 {offsets = [0, 64], sizes = [4, 32], strides = [1, 1]} : vector<4x96xf32> to vector<4x32xf32>
    %121 = vector.extract_strided_slice %103 {offsets = [0, 64], sizes = [4, 32], strides = [1, 1]} : vector<4x96xf32> to vector<4x32xf32>
    %122 = arith.addf %121, %7 : vector<4x32xf32>
    %123 = arith.mulf %111, %122 : vector<4x32xf32>
    %124 = arith.addf %120, %123 : vector<4x32xf32>
    %125 = math.tanh %124 : vector<4x32xf32>
    %cst_31 = arith.constant 1.000000e+00 : f32
    %126 = vector.broadcast %cst_31 : f32 to vector<4x32xf32>
    %127 = arith.subf %126, %119 : vector<4x32xf32>
    %128 = arith.mulf %127, %125 : vector<4x32xf32>
    %129 = arith.mulf %119, %99 : vector<4x32xf32>
    %130 = arith.addf %128, %129 : vector<4x32xf32>
    %131 = arith.addi %8, %c2_i32 : i32
    %132 = vector.broadcast %131 : i32 to vector<4x1xi32>
    %133 = arith.cmpi slt, %132, %3 : vector<4x1xi32>
    %cst_32 = arith.constant 0.000000e+00 : f32
    %134 = vector.shape_cast %133 : vector<4x1xi1> to vector<4x1xi1>
    %135 = vector.broadcast %134 : vector<4x1xi1> to vector<4x32xi1>
    %136 = vector.broadcast %cst_32 : f32 to vector<4x32xf32>
    %137 = arith.select %135, %130, %136 : vector<4x32xi1>, vector<4x32xf32>
    %138 = arith.index_cast %c2_i32 : i32 to index
    %c0_33 = arith.constant 0 : index
    %c0_34 = arith.constant 0 : index
    %139 = vector.load %arg6[%138, %c0_33, %c0_34] : memref<4x4x32xf32, #tpu.memory_space<vmem>>, vector<1x4x32xf32>
    %140 = vector.shape_cast %139 : vector<1x4x32xf32> to vector<4x32xf32>
    %141 = vector.shape_cast %137 : vector<4x32xf32> to vector<1x4x32xf32>
    tpu.vector_store %arg6[%138, %c0_33, %c0_34], %141 {strides = array<i32>} : memref<4x4x32xf32, #tpu.memory_space<vmem>>, vector<1x4x32xf32>,
    %142 = vector.shape_cast %133 : vector<4x1xi1> to vector<4x1xi1>
    %143 = vector.broadcast %142 : vector<4x1xi1> to vector<4x32xi1>
    %144 = arith.select %143, %130, %99 : vector<4x32xi1>, vector<4x32xf32>
    %c3_i32 = arith.constant 3 : i32
    %145 = arith.index_cast %c3_i32 : i32 to index
    %c0_35 = arith.constant 0 : index
    %c0_36 = arith.constant 0 : index
    %146 = vector.load %arg3[%145, %c0_35, %c0_36] : memref<4x4x96xf32, #tpu.memory_space<vmem>>, vector<1x4x96xf32>
    %147 = vector.shape_cast %146 : vector<1x4x96xf32> to vector<4x96xf32>
    %cst_37 = arith.constant dense<0.000000e+00> : vector<4x96xf32>
    %148 = tpu.matmul %144, %4, %cst_37 {dimension_numbers = #tpu.dot_dimension_numbers<[1], [0], [0], [1], [0, 0, 1, 1], [], []>} : vector<4x32xf32>, vector<32x96xf32>, vector<4x96xf32> -> vector<4x96xf32>
    %149 = vector.extract_strided_slice %147 {offsets = [0, 0], sizes = [4, 32], strides = [1, 1]} : vector<4x96xf32> to vector<4x32xf32>
    %150 = vector.extract_strided_slice %148 {offsets = [0, 0], sizes = [4, 32], strides = [1, 1]} : vector<4x96xf32> to vector<4x32xf32>
    %151 = arith.addf %149, %150 : vector<4x32xf32>
    %152 = arith.negf %151 : vector<4x32xf32>
    %153 = math.exp %152 : vector<4x32xf32>
    %cst_38 = arith.constant 1.000000e+00 : f32
    %154 = vector.broadcast %cst_38 : f32 to vector<4x32xf32>
    %155 = arith.addf %154, %153 : vector<4x32xf32>
    %156 = arith.divf %154, %155 : vector<4x32xf32>
    %157 = vector.extract_strided_slice %147 {offsets = [0, 32], sizes = [4, 32], strides = [1, 1]} : vector<4x96xf32> to vector<4x32xf32>
    %158 = vector.extract_strided_slice %148 {offsets = [0, 32], sizes = [4, 32], strides = [1, 1]} : vector<4x96xf32> to vector<4x32xf32>
    %159 = arith.addf %157, %158 : vector<4x32xf32>
    %160 = arith.negf %159 : vector<4x32xf32>
    %161 = math.exp %160 : vector<4x32xf32>
    %cst_39 = arith.constant 1.000000e+00 : f32
    %162 = vector.broadcast %cst_39 : f32 to vector<4x32xf32>
    %163 = arith.addf %162, %161 : vector<4x32xf32>
    %164 = arith.divf %162, %163 : vector<4x32xf32>
    %165 = vector.extract_strided_slice %147 {offsets = [0, 64], sizes = [4, 32], strides = [1, 1]} : vector<4x96xf32> to vector<4x32xf32>
    %166 = vector.extract_strided_slice %148 {offsets = [0, 64], sizes = [4, 32], strides = [1, 1]} : vector<4x96xf32> to vector<4x32xf32>
    %167 = arith.addf %166, %7 : vector<4x32xf32>
    %168 = arith.mulf %156, %167 : vector<4x32xf32>
    %169 = arith.addf %165, %168 : vector<4x32xf32>
    %170 = math.tanh %169 : vector<4x32xf32>
    %cst_40 = arith.constant 1.000000e+00 : f32
    %171 = vector.broadcast %cst_40 : f32 to vector<4x32xf32>
    %172 = arith.subf %171, %164 : vector<4x32xf32>
    %173 = arith.mulf %172, %170 : vector<4x32xf32>
    %174 = arith.mulf %164, %144 : vector<4x32xf32>
    %175 = arith.addf %173, %174 : vector<4x32xf32>
    %176 = arith.addi %8, %c3_i32 : i32
    %177 = vector.broadcast %176 : i32 to vector<4x1xi32>
    %178 = arith.cmpi slt, %177, %3 : vector<4x1xi32>
    %cst_41 = arith.constant 0.000000e+00 : f32
    %179 = vector.shape_cast %178 : vector<4x1xi1> to vector<4x1xi1>
    %180 = vector.broadcast %179 : vector<4x1xi1> to vector<4x32xi1>
    %181 = vector.broadcast %cst_41 : f32 to vector<4x32xf32>
    %182 = arith.select %180, %175, %181 : vector<4x32xi1>, vector<4x32xf32>
    %183 = arith.index_cast %c3_i32 : i32 to index
    %c0_42 = arith.constant 0 : index
    %c0_43 = arith.constant 0 : index
    %184 = vector.load %arg6[%183, %c0_42, %c0_43] : memref<4x4x32xf32, #tpu.memory_space<vmem>>, vector<1x4x32xf32>
    %185 = vector.shape_cast %184 : vector<1x4x32xf32> to vector<4x32xf32>
    %186 = vector.shape_cast %182 : vector<4x32xf32> to vector<1x4x32xf32>
    tpu.vector_store %arg6[%183, %c0_42, %c0_43], %186 {strides = array<i32>} : memref<4x4x32xf32, #tpu.memory_space<vmem>>, vector<1x4x32xf32>,
    %187 = vector.shape_cast %178 : vector<4x1xi1> to vector<4x1xi1>
    %188 = vector.broadcast %187 : vector<4x1xi1> to vector<4x32xi1>
    %189 = arith.select %188, %175, %144 : vector<4x32xi1>, vector<4x32xf32>
    %c4_i32_44 = arith.constant 4 : i32
    %c0_45 = arith.constant 0 : index
    %c0_46 = arith.constant 0 : index
    %190 = vector.load %arg8[%c0_45, %c0_46] : memref<4x32xf32, #tpu.memory_space<vmem>>, vector<4x32xf32>
    tpu.vector_store %arg8[%c0_45, %c0_46], %189 {strides = array<i32>} : memref<4x32xf32, #tpu.memory_space<vmem>>, vector<4x32xf32>,
    %c2_i32_47 = arith.constant 2 : i32
    %191 = arith.cmpi eq, %arg1, %c2_i32_47 : i32
    %192 = arith.extui %191 : i1 to i32
    %c0_i32_48 = arith.constant 0 : i32
    %193 = arith.cmpi ne, %192, %c0_i32_48 : i32
    scf.if %193 {
      %c0_49 = arith.constant 0 : index
      %c0_50 = arith.constant 0 : index
      %194 = vector.load %arg7[%c0_49, %c0_50] : memref<4x32xf32, #tpu.memory_space<vmem>>, vector<4x32xf32>
      tpu.vector_store %arg7[%c0_49, %c0_50], %189 {strides = array<i32>} : memref<4x32xf32, #tpu.memory_space<vmem>>, vector<4x32xf32>,
    } else {
    }
    return
  }
  func.func @transform_0(%arg0: i32, %arg1: i32) -> (i32, i32) {
    %c0_i32 = arith.constant 0 : i32
    %c0_i32_0 = arith.constant 0 : i32
    return %arg0, %c0_i32 : i32, i32
  }
  func.func @transform_1(%arg0: i32, %arg1: i32) -> (i32, i32, i32) {
    %c0_i32 = arith.constant 0 : i32
    %c0_i32_0 = arith.constant 0 : i32
    return %arg1, %arg0, %c0_i32 : i32, i32, i32
  }
  func.func @transform_2(%arg0: i32, %arg1: i32) -> (i32, i32) {
    %c0_i32 = arith.constant 0 : i32
    %c0_i32_0 = arith.constant 0 : i32
    %c0_i32_1 = arith.constant 0 : i32
    return %c0_i32, %c0_i32_0 : i32, i32
  }
  func.func @transform_3(%arg0: i32, %arg1: i32) -> (i32, i32) {
    %c0_i32 = arith.constant 0 : i32
    %c0_i32_0 = arith.constant 0 : i32
    %c0_i32_1 = arith.constant 0 : i32
    return %c0_i32, %c0_i32_0 : i32, i32
  }
  func.func @transform_4(%arg0: i32, %arg1: i32) -> (i32, i32, i32) {
    %c0_i32 = arith.constant 0 : i32
    %c0_i32_0 = arith.constant 0 : i32
    return %arg1, %arg0, %c0_i32 : i32, i32, i32
  }
  func.func @transform_5(%arg0: i32, %arg1: i32) -> (i32, i32) {
    %c0_i32 = arith.constant 0 : i32
    %c0_i32_0 = arith.constant 0 : i32
    return %arg0, %c0_i32 : i32, i32
  }
}

</mosaic_0001>

<llo_original>
// kernel: tpu_custom_call.1
$region0: #{tpu_custom_call.1}
  #allocation0 [shape = 'u32[]', space=smem, size = 0x4, offset = 0x4, fixed_abs, tag = 'smem constant byte address 0x4 - core index']
  #allocation1 [shape = 'u32[144,128]{1,0:T(1,128)}', space=vmem, size = 0x12000, scoped, tag = 'internal scratch']
  #allocation2 [shape = 'f32[4,32]{1,0:T(4,128)}', space=vmem, size = 0x800, scoped, tag = 'scratch operand']
  %s0 = inlined_call_operand.vmem [shape: s32[4,1], index: 0, kind: input, shape index: {}]
  %s1 = inlined_call_operand.hbm [shape: f32[12,4,96], index: 1, kind: input, shape index: {}]
  %s2 = inlined_call_operand.hbm [shape: f32[32,96], index: 2, kind: input, shape index: {}]
  %s3 = inlined_call_operand.vmem [shape: f32[1,32], index: 3, kind: input, shape index: {}]
  %s4 = inlined_call_operand.hbm [shape: f32[12,4,32], index: 4, kind: output, shape index: {0}]
  %s5 = inlined_call_operand.hbm [shape: f32[4,32], index: 5, kind: output, shape index: {1}]
  %6 = xla_tuple %s4, %s5
  %s7 = sld [smem:[#allocation0]]
  $region73: #{tpu_custom_call.1} parent=0
    _
  %s9 = ssub.s32 1, %s7
  %s10 = scalar_select 0, %s9, %s7
  $region1: #{tpu_custom_call.1} parent=0
    #allocation3 [shape = 'u8[16384]{0}', space=vmem, size = 0x4000, scoped, tag = 'input window, operand 1']
    #allocation4 [shape = 's32[2]{0}', space=sflag, size = 0x8, scoped, tag = 'scoped memory for tpu_custom_call.1']
    #allocation5 [shape = 's32[2]{0}', space=sflag, size = 0x8, scoped, tag = 'scoped memory for tpu_custom_call.1']
    #allocation6 [shape = 'u8[16384]{0}', space=vmem, size = 0x4000, scoped, tag = 'input window, operand 2, single buffered']
    #allocation7 [shape = 's32[1]{0}', space=sflag, size = 0x4, scoped, tag = 'scoped memory for tpu_custom_call.1']
    #allocation8 [shape = 'u8[16384]{0}', space=vmem, size = 0x4000, scoped, tag = 'output window, operand 0']
    #allocation9 [shape = 'u8[2048]{0}', space=vmem, size = 0x800, scoped, tag = 'output window, operand 1, single buffered']
    #allocation10 [shape = 's32[1]{0}', space=sflag, size = 0x4, scoped, tag = 'scoped memory for tpu_custom_call.1']
    %11 = vsyncpa [#allocation4], 0
    %s12 = scalar_lea.sflag [#allocation4], 1
    %13 = vsyncpa %s12, 0
    %14 = vsyncpa [#allocation7], 0
    %15 = vsyncpa [#allocation5], 0
    %s16 = scalar_lea.sflag [#allocation5], 1
    %17 = vsyncpa %s16, 0
    %18 = vsyncpa [#allocation10], 0
    loop: start=0, step=1, limit=5
    $region2: #{tpu_custom_call.1} parent=1 // loop_pre_header
      _
    $region3: #{tpu_custom_call.1} parent=1 // loop_header
      %s20 = sphi 0, %s24
      %p21 = scmp.ge.s32.totalorder %s20, 5
      %s27 = sphi 0, %s39
      %s28 = sphi 0, %s35
      %s29 = sphi 0, %s27
      %s30 = sphi 0, %s28
      %s31 = sphi 0, %s29
      %s32 = sphi 0, %s30
      %s42 = sphi 0, %s44
      %s45 = sphi 0, %s42
      %s46 = sphi 0, %s45
      %s62 = sphi 0, %s46
      %s70 = sphi 0, %s72
      %s73 = sphi 0, %s70
      %s74 = sphi 0, %s73
      %s90 = sphi 0, %s74
      %s94 = sphi 0, %s94
      %s96 = sphi 0, %s94
      %s97 = sphi 0, %s96
      %s111 = sphi 0, %s97
      %s115 = sphi 0, %s115
      %s117 = sphi 0, %s115
      %s118 = sphi 0, %s117
      %s132 = sphi 0, %s118
      %s140 = sphi 0, %s142
      %s143 = sphi 0, %s140
      %s144 = sphi 0, %s143
      %s160 = sphi 0, %s144
      %s166 = sphi 0, %s168
      %s169 = sphi 0, %s166
      %s170 = sphi 0, %s169
      %s186 = sphi 0, %s170
    $region4: #{tpu_custom_call.1} parent=1 // loop_header_branch
      %23 = sbr.rel (%p21) target = $region8
    $region5: #{tpu_custom_call.1} parent=1 // loop_body
      %s25 = ssub.s32 %s20, 1
      %s26 = ssub.s32 %s20, 2
      %s33 = sadd.s32 1, %s28
      %p34 = scmp.ge.s32.totalorder %s33, 3
      %s35 = scalar_select %p34, 0, %s33
      %s36 = sadd.s32 1, %s27
      %s37 = scalar_select %p34, %s36, %s27
      %p38 = scmp.ge.s32.totalorder %s37, 1
      %s39 = scalar_select %p38, 0, %s37
      %s40 = ssub.s32 %s27, %s39
      %p41 = scmp.eq.s32.totalorder %s40, 0
      %s43 = sadd.s32 %s42, 1
      %s44 = scalar_select %p41, %s42, %s43
      %p47 = pneg %p41
      %p48 = scmp.eq.s32.totalorder %s20, 2
      %p49 = por %p47, %p48
      %p50 = scmp.ne.s32.totalorder %s42, %s45
      %p51 = scmp.eq.s32.totalorder %s20, 0
      %p52 = por %p50, %p51
      %p53 = scmp.ne.s32.totalorder %s42, %s45
      %p54 = scmp.eq.s32.totalorder %s25, 2
      %p55 = por %p53, %p54
      %p56 = scmp.ne.s32.totalorder %s45, %s46
      %p57 = scmp.eq.s32.totalorder %s25, 0
      %p58 = por %p56, %p57
      %p59 = scmp.ne.s32.totalorder %s45, %s46
      %p60 = scmp.eq.s32.totalorder %s26, 2
      %p61 = por %p59, %p60
      %p63 = scmp.ne.s32.totalorder %s46, %s62
      %p64 = scmp.eq.s32.totalorder %s26, 0
      %p65 = por %p63, %p64
      %s66 = ssub.s32 %s28, %s35
      %s67 = ssub.s32 %s27, %s39
      %s68 = sor.u32 %s66, %s67
      %p69 = scmp.eq.s32.totalorder %s68, 0
      %s71 = sadd.s32 %s70, 1
      %s72 = scalar_select %p69, %s70, %s71
      %p75 = pneg %p69
      %p76 = scmp.eq.s32.totalorder %s20, 2
      %p77 = por %p75, %p76
      %p78 = scmp.ne.s32.totalorder %s70, %s73
      %p79 = scmp.eq.s32.totalorder %s20, 0
      %p80 = por %p78, %p79
      %p81 = scmp.ne.s32.totalorder %s70, %s73
      %p82 = scmp.eq.s32.totalorder %s25, 2
      %p83 = por %p81, %p82
      %p84 = scmp.ne.s32.totalorder %s73, %s74
      %p85 = scmp.eq.s32.totalorder %s25, 0
      %p86 = por %p84, %p85
      %p87 = scmp.ne.s32.totalorder %s73, %s74
      %p88 = scmp.eq.s32.totalorder %s26, 2
      %p89 = por %p87, %p88
      %p91 = scmp.ne.s32.totalorder %s74, %s90
      %p92 = scmp.eq.s32.totalorder %s26, 0
      %p93 = por %p91, %p92
      %s95 = sadd.s32 %s94, 1
      %p98 = scmp.eq.s32.totalorder %s20, 2
      %p99 = scmp.ne.s32.totalorder %s94, %s96
      %p100 = scmp.eq.s32.totalorder %s20, 0
      %p101 = por %p99, %p100
      %p102 = scmp.ne.s32.totalorder %s94, %s96
      %p103 = scmp.eq.s32.totalorder %s25, 2
      %p104 = por %p102, %p103
      %p105 = scmp.ne.s32.totalorder %s96, %s97
      %p106 = scmp.eq.s32.totalorder %s25, 0
      %p107 = por %p105, %p106
      %p108 = scmp.ne.s32.totalorder %s96, %s97
      %p109 = scmp.eq.s32.totalorder %s26, 2
      %p110 = por %p108, %p109
      %p112 = scmp.ne.s32.totalorder %s97, %s111
      %p113 = scmp.eq.s32.totalorder %s26, 0
      %p114 = por %p112, %p113
      %s116 = sadd.s32 %s115, 1
      %p119 = scmp.eq.s32.totalorder %s20, 2
      %p120 = scmp.ne.s32.totalorder %s115, %s117
      %p121 = scmp.eq.s32.totalorder %s20, 0
      %p122 = por %p120, %p121
      %p123 = scmp.ne.s32.totalorder %s115, %s117
      %p124 = scmp.eq.s32.totalorder %s25, 2
      %p125 = por %p123, %p124
      %p126 = scmp.ne.s32.totalorder %s117, %s118
      %p127 = scmp.eq.s32.totalorder %s25, 0
      %p128 = por %p126, %p127
      %p129 = scmp.ne.s32.totalorder %s117, %s118
      %p130 = scmp.eq.s32.totalorder %s26, 2
      %p131 = por %p129, %p130
      %p133 = scmp.ne.s32.totalorder %s118, %s132
      %p134 = scmp.eq.s32.totalorder %s26, 0
      %p135 = por %p133, %p134
      %s136 = ssub.s32 %s28, %s35
      %s137 = ssub.s32 %s27, %s39
      %s138 = sor.u32 %s136, %s137
      %p139 = scmp.eq.s32.totalorder %s138, 0
      %s141 = sadd.s32 %s140, 1
      %s142 = scalar_select %p139, %s140, %s141
      %p145 = pneg %p139
      %p146 = scmp.eq.s32.totalorder %s20, 2
      %p147 = por %p145, %p146
      %p148 = scmp.ne.s32.totalorder %s140, %s143
      %p149 = scmp.eq.s32.totalorder %s20, 0
      %p150 = por %p148, %p149
      %p151 = scmp.ne.s32.totalorder %s140, %s143
      %p152 = scmp.eq.s32.totalorder %s25, 2
      %p153 = por %p151, %p152
      %p154 = scmp.ne.s32.totalorder %s143, %s144
      %p155 = scmp.eq.s32.totalorder %s25, 0
      %p156 = por %p154, %p155
      %p157 = scmp.ne.s32.totalorder %s143, %s144
      %p158 = scmp.eq.s32.totalorder %s26, 2
      %p159 = por %p157, %p158
      %p161 = scmp.ne.s32.totalorder %s144, %s160
      %p162 = scmp.eq.s32.totalorder %s26, 0
      %p163 = por %p161, %p162
      %s164 = ssub.s32 %s27, %s39
      %p165 = scmp.eq.s32.totalorder %s164, 0
      %s167 = sadd.s32 %s166, 1
      %s168 = scalar_select %p165, %s166, %s167
      %p171 = pneg %p165
      %p172 = scmp.eq.s32.totalorder %s20, 2
      %p173 = por %p171, %p172
      %p174 = scmp.ne.s32.totalorder %s166, %s169
      %p175 = scmp.eq.s32.totalorder %s20, 0
      %p176 = por %p174, %p175
      %p177 = scmp.ne.s32.totalorder %s166, %s169
      %p178 = scmp.eq.s32.totalorder %s25, 2
      %p179 = por %p177, %p178
      %p180 = scmp.ne.s32.totalorder %s169, %s170
      %p181 = scmp.eq.s32.totalorder %s25, 0
      %p182 = por %p180, %p181
      %p183 = scmp.ne.s32.totalorder %s169, %s170
      %p184 = scmp.eq.s32.totalorder %s26, 2
      %p185 = por %p183, %p184
      %p187 = scmp.ne.s32.totalorder %s170, %s186
      %p188 = scmp.eq.s32.totalorder %s26, 0
      %p189 = por %p187, %p188
      %p190 = scmp.le.s32.totalorder 1, %s20
      %p191 = scmp.lt.s32.totalorder %s20, 4
      %p192 = pnand %p190, %p191
      %p193 = pneg %p192
      // Predicated region
      $region9: #{tpu_custom_call.1} parent=5 // pred_check
        _
      $region10: #{tpu_custom_call.1} parent=5 // pred_check_branch
        %195 = sbr.rel (%p192) target = $region12
      $region11: #{tpu_custom_call.1} parent=5 // pred_region
        %s196 = ssub.s32 %s20, 1
        // Predicated region
        $region13: #{tpu_custom_call.1} parent=11 // pred_check
          %p197 = pneg %p58
        $region14: #{tpu_custom_call.1} parent=11 // pred_check_branch
          %199 = sbr.rel (%p197) target = $region16
        $region15: #{tpu_custom_call.1} parent=11 // pred_region
          %p200 = scmp.lt.s32.totalorder %s29, 0
          %s201 = scalar_select %p200, %s29, 0
          %s202 = smul.addr %s201, 4
          %s203 = scalar_lea.vmem %s0, %s202
        $region16: #{tpu_custom_call.1} parent=11 // pred_fallthru
          _
        // Predicated region
        $region17: #{tpu_custom_call.1} parent=11 // pred_check
          %p204 = pneg %p107
        $region18: #{tpu_custom_call.1} parent=11 // pred_check_branch
          %206 = sbr.rel (%p204) target = $region20
        $region19: #{tpu_custom_call.1} parent=11 // pred_region
          %s208 = ssub.s32 512, 512
          %209 = vsyncadd [#allocation7], %s208
          %s210 = sshll.u32 [#allocation6], 4
          %s211 = int_to_ptr.vmem [resolvable:$true] %s210
          %216 = dma.hbm_to_vmem [thread:$0]  %s2, 512, %s211, [#allocation7], 128, 128, 8
        $region20: #{tpu_custom_call.1} parent=11 // pred_fallthru
          _
        // Predicated region
        $region21: #{tpu_custom_call.1} parent=11 // pred_check
          %p217 = pneg %p128
        $region22: #{tpu_custom_call.1} parent=11 // pred_check_branch
          %219 = sbr.rel (%p217) target = $region24
        $region23: #{tpu_custom_call.1} parent=11 // pred_region
          _
        $region24: #{tpu_custom_call.1} parent=11 // pred_fallthru
          _
      $region12: #{tpu_custom_call.1} parent=5 // pred_fallthru
        _
      %p220 = scmp.lt.s32.totalorder %s20, 3
      // Predicated region
      $region25: #{tpu_custom_call.1} parent=5 // pred_check
        %p221 = pneg %p220
      $region26: #{tpu_custom_call.1} parent=5 // pred_check_branch
        %223 = sbr.rel (%p221) target = $region28
      $region27: #{tpu_custom_call.1} parent=5 // pred_region
        // Predicated region
        $region29: #{tpu_custom_call.1} parent=27 // pred_check
          %p224 = pneg %p80
        $region30: #{tpu_custom_call.1} parent=27 // pred_check_branch
          %226 = sbr.rel (%p224) target = $region32
        $region31: #{tpu_custom_call.1} parent=27 // pred_region
          %s227 = sand.u32 %s70, 1
          %s228 = scalar_lea.sflag [#allocation4], %s227
          %s229 = sand.u32 %s70, 1
          %s230 = smul.addr %s229, 16
          %s231 = scalar_lea.vmem [#allocation3], %s230
          %s232 = smul.u32 4, %s28
          %s234 = ssub.s32 256, 256
          %235 = vsyncadd %s228, %s234
          %s236 = sadd.s32 %s27, %s232
          %s237 = smul.addr %s236, 64
          %s238 = scalar_lea.hbm %s1, %s237
          %s239 = sshll.u32 %s231, 4
          %s240 = int_to_ptr.vmem [resolvable:$true] %s239
          %245 = dma.hbm_to_vmem [thread:$0]  %s238, 256, %s240, %s228, 64, 64, 4
        $region32: #{tpu_custom_call.1} parent=27 // pred_fallthru
          _
      $region28: #{tpu_custom_call.1} parent=5 // pred_fallthru
        _
      %p246 = scmp.le.s32.totalorder 1, %s20
      %p247 = scmp.lt.s32.totalorder %s20, 4
      %p248 = pnand %p246, %p247
      %p249 = pneg %p248
      // Predicated region
      $region33: #{tpu_custom_call.1} parent=5 // pred_check
        _
      $region34: #{tpu_custom_call.1} parent=5 // pred_check_branch
        %251 = sbr.rel (%p248) target = $region36
      $region35: #{tpu_custom_call.1} parent=5 // pred_region
        %s252 = ssub.s32 %s20, 1
        %s253 = sand.u32 %s73, 1
        %s254 = scalar_lea.sflag [#allocation4], %s253
        %s255 = sand.u32 %s73, 1
        %s256 = smul.addr %s255, 16
        %s257 = scalar_lea.vmem [#allocation3], %s256
        // Predicated region
        $region37: #{tpu_custom_call.1} parent=35 // pred_check
          %p258 = pneg %p86
        $region38: #{tpu_custom_call.1} parent=35 // pred_check_branch
          %260 = sbr.rel (%p258) target = $region40
        $region39: #{tpu_custom_call.1} parent=35 // pred_region
          %261 = dma.done %s254, 256
        $region40: #{tpu_custom_call.1} parent=35 // pred_fallthru
          _
        // Predicated region
        $region41: #{tpu_custom_call.1} parent=35 // pred_check
          %p262 = pneg %p107
        $region42: #{tpu_custom_call.1} parent=35 // pred_check_branch
          %264 = sbr.rel (%p262) target = $region44
        $region43: #{tpu_custom_call.1} parent=35 // pred_region
          %265 = dma.done [#allocation7], 512
        $region44: #{tpu_custom_call.1} parent=35 // pred_fallthru
          _
        %p266 = scmp.lt.s32.totalorder %s29, 0
        %s267 = scalar_select %p266, %s29, 0
        %s268 = smul.addr %s267, 4
        %s269 = scalar_lea.vmem %s0, %s268
        %p270 = pneg %p58
        %p271 = pneg %p55
        %s272 = sand.u32 %s73, 1
        %s273 = scalar_lea.sflag [#allocation4], %s272
        %s274 = sand.u32 %s73, 1
        %s275 = smul.addr %s274, 16
        %s276 = scalar_lea.vmem [#allocation3], %s275
        %p277 = pneg %p86
        %p278 = pneg %p83
        %p279 = pneg %p107
        %p280 = pneg %p104
        %p281 = pneg %p128
        %p282 = pneg %p125
        %p283 = pneg %p156
        %p284 = pneg %p153
        %s285 = sand.u32 %s143, 1
        %s286 = scalar_lea.sflag [#allocation5], %s285
        %s287 = sand.u32 %s143, 1
        %s288 = smul.addr %s287, 16
        %s289 = scalar_lea.vmem [#allocation8], %s288
        %p290 = pneg %p182
        %p291 = pneg %p179
        %p292 = scmp.lt.s32.totalorder %s29, 0
        %s293 = scalar_select %p292, %s29, 0
        %s294 = smul.addr %s293, 4
        %s295 = scalar_lea.vmem %s0, %s294
        %s296 = smul.u32 4, %s30
        %s297 = smul.u32 4, %s30
        %p298 = scmp.eq.s32.totalorder %s30, 0
        // Predicated region
        $region45: #{tpu_custom_call.1} parent=35 // pred_check
          %p299 = pneg %p298
        $region46: #{tpu_custom_call.1} parent=35 // pred_check_branch
          %301 = sbr.rel (%p299) target = $region48
        $region47: #{tpu_custom_call.1} parent=35 // pred_region
          %vm302 = vcmask 257024
          %303 = vst.msk [vmem:[#allocation2] sm:$0xf] %vm302, 0.0
        $region48: #{tpu_custom_call.1} parent=35 // pred_fallthru
          _
        %v304 = vld [vmem:[%s295] sm:$0xf]
        %v305 = vld [vmem:[#allocation6] sm:$0xff]
        %v306 = vld [vmem:[#allocation6 + $0x8] sm:$0xff]
        %v307 = vld [vmem:[#allocation6 + $0x10] sm:$0xff]
        %v308 = vld [vmem:[#allocation6 + $0x18] sm:$0xff]
        %v309 = vld [vmem:[%s3] sm:$0x1]
        %v311 = vlaneseq
        %v312 = vshrl.u32 %v311, 7
        %v313 = vsub.s32 0, %v312
        %v314 = vrot.slane %v309, %v313
        %s315 = smul.u32 %s30, 4
        %v316 = vld [vmem:[#allocation2] sm:$0xf]
        %v317 = vld [vmem:[%s257] sm:$0xf]
        %vm318 = vcmask 261120
        %v320 = vsel %vm318, %v316, 0
        %322 = vmatprep.subr.mxu0 0.0
        %323 = vmatpush1.msra.mxu0 0.0
        %324 = vmatprep.subr.mxu0 0.0
        %325 = vmatpush1.msra.mxu0 0.0
        %326 = vmatprep.subr.mxu0 0.0
        %327 = vmatpush1.msra.mxu0 0.0
        %328 = vmatprep.subr.mxu0 0.0
        %329 = vmatpush1.msra.mxu0 0.0
        %330 = vmatprep.subr.mxu0 0.0
        %331 = vmatpush1.msra.mxu0 0.0
        %332 = vmatprep.subr.mxu0 0.0
        %333 = vmatpush1.msra.mxu0 0.0
        %334 = vmatprep.subr.mxu0 0.0
        %335 = vmatpush1.msra.mxu0 0.0
        %336 = vmatprep.subr.mxu0 0.0
        %337 = vmatpush1.msra.mxu0 0.0
        %338 = vmatprep.subr.mxu0 0.0
        %339 = vmatpush1.msra.mxu0 0.0
        %340 = vmatprep.subr.mxu0 0.0
        %341 = vmatpush1.msra.mxu0 0.0
        %342 = vmatprep.subr.mxu0 0.0
        %343 = vmatpush1.msra.mxu0 0.0
        %344 = vmatprep.subr.mxu0 0.0
        %345 = vmatpush1.msra.mxu0 0.0
        %346 = vmatprep.subr.mxu0 0.0
        %347 = vmatpush1.msra.mxu0 %v308
        %348 = vmatprep.subr.mxu0 0.0
        %349 = vmatpush1.msra.mxu0 %v307
        %350 = vmatprep.subr.mxu0 0.0
        %351 = vmatpush1.msra.mxu0 %v306
        %352 = vmatprep.subr.mxu0 0.0
        %353 = vmatpush1.msra.mxu0 %v305
        %354 = vmatprep.subr.mxu0 0.0
        %355 = vmatpush2.msra.mxu0 0.0
        %356 = vmatprep.subr.mxu0 0.0
        %357 = vmatpush2.msra.mxu0 0.0
        %358 = vmatprep.subr.mxu0 0.0
        %359 = vmatpush2.msra.mxu0 0.0
        %360 = vmatprep.subr.mxu0 0.0
        %361 = vmatpush2.msra.mxu0 0.0
        %362 = vmatprep.subr.mxu0 0.0
        %363 = vmatpush2.msra.mxu0 0.0
        %364 = vmatprep.subr.mxu0 0.0
        %365 = vmatpush2.msra.mxu0 0.0
        %366 = vmatprep.subr.mxu0 0.0
        %367 = vmatpush2.msra.mxu0 0.0
        %368 = vmatprep.subr.mxu0 0.0
        %369 = vmatpush2.msra.mxu0 0.0
        %370 = vmatprep.subr.mxu0 0.0
        %371 = vmatpush2.msra.mxu0 0.0
        %372 = vmatprep.subr.mxu0 0.0
        %373 = vmatpush2.msra.mxu0 0.0
        %374 = vmatprep.subr.mxu0 0.0
        %375 = vmatpush2.msra.mxu0 0.0
        %376 = vmatprep.subr.mxu0 0.0
        %377 = vmatpush2.msra.mxu0 0.0
        %378 = vmatprep.subr.mxu0 0.0
        %379 = vmatpush2.msra.mxu0 0.0
        %380 = vmatprep.subr.mxu0 0.0
        %381 = vmatpush2.msra.mxu0 0.0
        %382 = vmatprep.subr.mxu0 0.0
        %383 = vmatpush2.msra.mxu0 0.0
        %384 = vmatprep.subr.mxu0 0.0
        %385 = vmatpush2.msra.mxu0 0.0
        %386 = vmatprep.mubr.f32.mxu0 0.0
        %387 = vmatmul.mubr.f32.gmra.mxu0 %v320
        %v388 = vpop.f32.mrf.mxu0
        %v389 = vadd.f32 0.0, %v388
        %v390 = vpop.f32.mrf.mxu0
        %391 = vdwg.mxu0
        %v392 = vadd.f32 %v317, %v389
        %v393 = vxor.u32 %v392, 2147483648
        %v394 = vmul.f32 %v393, 1.442695
        %v395 = vpow.pop %v394
        %v396 = vadd.f32 %v395, 1.0
        %v397 = vrcp.pop %v396
        %v398 = vmul.f32 1.0, %v397
        %399 = vrot.lane.b32.xlu0 %v314, 64
        %v400 = vpop.permute.xlu0 %399
        %v402 = vadd.f32 %v389, %v400
        %404 = vrot.lane.b32.xlu0 %v402, 64
        %v405 = vpop.permute.xlu0 %404
        %v407 = vmul.f32 %v398, %v405
        %409 = vrot.lane.b32.xlu0 %v407, 64
        %v410 = vpop.permute.xlu0 %409
        %v412 = vadd.f32 %v317, %v410
        %v413 = vtanh.pop %v412
        %v414 = vsub.f32 1.0, %v398
        %416 = vrot.lane.b32.xlu0 %v413, 96
        %v417 = vpop.permute.xlu0 %416
        %v419 = vmul.f32 %v414, %v417
        %420 = vrot.lane.b32.xlu0 %v316, 32
        %v421 = vpop.permute.xlu0 %420
        %v423 = vmul.f32 %v398, %v421
        %v424 = vadd.f32 %v419, %v423
        %v425 = vstv %s315
        %vm426 = vcmp.lt.s32.totalorder %v425, %v304
        %v427 = vsel %vm426, 1, 0
        %428 = vset.pattern.permute.xlu0 0
        %429 = vperm.xlu0 %428, %v427
        %v430 = vpop.permute.xlu0 %429
        %vm431 = vcmp.eq.s32.totalorder %v430, 1
        %v432 = vsel %vm431, %v424, 0.0
        %434 = vrot.lane.b32.xlu0 %v432, 96
        %v435 = vpop.permute.xlu0 %434
        %vm437 = vcmask 257024
        %438 = vst.msk [vmem:[%s289] sm:$0xf] %vm437, %v435
        %v439 = vsel %vm431, %v424, %v421
        %s440 = scalar_lea.vmem %s257, 4 [#allocation3]
        %v441 = vld [vmem:[%s440] sm:$0xf]
        %443 = vrot.lane.b32.xlu0 %v439, 96
        %v444 = vpop.permute.xlu0 %443
        %v445 = vsel %vm318, %v444, 0
        %447 = vmatprep.subr.mxu0 0.0
        %448 = vmatpush1.msra.mxu0 0.0
        %449 = vmatprep.subr.mxu0 0.0
        %450 = vmatpush1.msra.mxu0 0.0
        %451 = vmatprep.subr.mxu0 0.0
        %452 = vmatpush1.msra.mxu0 0.0
        %453 = vmatprep.subr.mxu0 0.0
        %454 = vmatpush1.msra.mxu0 0.0
        %455 = vmatprep.subr.mxu0 0.0
        %456 = vmatpush1.msra.mxu0 0.0
        %457 = vmatprep.subr.mxu0 0.0
        %458 = vmatpush1.msra.mxu0 0.0
        %459 = vmatprep.subr.mxu0 0.0
        %460 = vmatpush1.msra.mxu0 0.0
        %461 = vmatprep.subr.mxu0 0.0
        %462 = vmatpush1.msra.mxu0 0.0
        %463 = vmatprep.subr.mxu0 0.0
        %464 = vmatpush1.msra.mxu0 0.0
        %465 = vmatprep.subr.mxu0 0.0
        %466 = vmatpush1.msra.mxu0 0.0
        %467 = vmatprep.subr.mxu0 0.0
        %468 = vmatpush1.msra.mxu0 0.0
        %469 = vmatprep.subr.mxu0 0.0
        %470 = vmatpush1.msra.mxu0 0.0
        %471 = vmatprep.subr.mxu0 0.0
        %472 = vmatpush1.msra.mxu0 %v308
        %473 = vmatprep.subr.mxu0 0.0
        %474 = vmatpush1.msra.mxu0 %v307
        %475 = vmatprep.subr.mxu0 0.0
        %476 = vmatpush1.msra.mxu0 %v306
        %477 = vmatprep.subr.mxu0 0.0
        %478 = vmatpush1.msra.mxu0 %v305
        %479 = vmatprep.subr.mxu0 0.0
        %480 = vmatpush2.msra.mxu0 0.0
        %481 = vmatprep.subr.mxu0 0.0
        %482 = vmatpush2.msra.mxu0 0.0
        %483 = vmatprep.subr.mxu0 0.0
        %484 = vmatpush2.msra.mxu0 0.0
        %485 = vmatprep.subr.mxu0 0.0
        %486 = vmatpush2.msra.mxu0 0.0
        %487 = vmatprep.subr.mxu0 0.0
        %488 = vmatpush2.msra.mxu0 0.0
        %489 = vmatprep.subr.mxu0 0.0
        %490 = vmatpush2.msra.mxu0 0.0
        %491 = vmatprep.subr.mxu0 0.0
        %492 = vmatpush2.msra.mxu0 0.0
        %493 = vmatprep.subr.mxu0 0.0
        %494 = vmatpush2.msra.mxu0 0.0
        %495 = vmatprep.subr.mxu0 0.0
        %496 = vmatpush2.msra.mxu0 0.0
        %497 = vmatprep.subr.mxu0 0.0
        %498 = vmatpush2.msra.mxu0 0.0
        %499 = vmatprep.subr.mxu0 0.0
        %500 = vmatpush2.msra.mxu0 0.0
        %501 = vmatprep.subr.mxu0 0.0
        %502 = vmatpush2.msra.mxu0 0.0
        %503 = vmatprep.subr.mxu0 0.0
        %504 = vmatpush2.msra.mxu0 0.0
        %505 = vmatprep.subr.mxu0 0.0
        %506 = vmatpush2.msra.mxu0 0.0
        %507 = vmatprep.subr.mxu0 0.0
        %508 = vmatpush2.msra.mxu0 0.0
        %509 = vmatprep.subr.mxu0 0.0
        %510 = vmatpush2.msra.mxu0 0.0
        %511 = vmatprep.mubr.f32.mxu0 0.0
        %512 = vmatmul.mubr.f32.gmra.mxu0 %v445
        %v513 = vpop.f32.mrf.mxu0
        %v514 = vadd.f32 0.0, %v513
        %v515 = vpop.f32.mrf.mxu0
        %516 = vdwg.mxu0
        %v517 = vadd.f32 %v441, %v514
        %v518 = vxor.u32 %v517, 2147483648
        %v519 = vmul.f32 %v518, 1.442695
        %v520 = vpow.pop %v519
        %v521 = vadd.f32 %v520, 1.0
        %v522 = vrcp.pop %v521
        %v523 = vmul.f32 1.0, %v522
        %v524 = vadd.f32 %v514, %v400
        %526 = vrot.lane.b32.xlu0 %v524, 64
        %v527 = vpop.permute.xlu0 %526
        %v529 = vmul.f32 %v523, %v527
        %531 = vrot.lane.b32.xlu0 %v529, 64
        %v532 = vpop.permute.xlu0 %531
        %v534 = vadd.f32 %v441, %v532
        %v535 = vtanh.pop %v534
        %v536 = vsub.f32 1.0, %v523
        %538 = vrot.lane.b32.xlu0 %v535, 96
        %v539 = vpop.permute.xlu0 %538
        %v541 = vmul.f32 %v536, %v539
        %v542 = vmul.f32 %v523, %v439
        %v543 = vadd.f32 %v541, %v542
        %s544 = sadd.s32 %s315, 1
        %v545 = vstv %s544
        %vm546 = vcmp.lt.s32.totalorder %v545, %v304
        %v547 = vsel %vm546, 1, 0
        %548 = vset.pattern.permute.xlu0 0
        %549 = vperm.xlu0 %548, %v547
        %v550 = vpop.permute.xlu0 %549
        %vm551 = vcmp.eq.s32.totalorder %v550, 1
        %v552 = vsel %vm551, %v543, 0.0
        %554 = vrot.lane.b32.xlu0 %v552, 96
        %v555 = vpop.permute.xlu0 %554
        %s557 = scalar_lea.vmem %s289, 4 [#allocation8]
        %558 = vst.msk [vmem:[%s557] sm:$0xf] %vm437, %v555
        %v559 = vsel %vm551, %v543, %v439
        %s560 = scalar_lea.vmem %s257, 8 [#allocation3]
        %v561 = vld [vmem:[%s560] sm:$0xf]
        %563 = vrot.lane.b32.xlu0 %v559, 96
        %v564 = vpop.permute.xlu0 %563
        %v565 = vsel %vm318, %v564, 0
        %567 = vmatprep.subr.mxu0 0.0
        %568 = vmatpush1.msra.mxu0 0.0
        %569 = vmatprep.subr.mxu0 0.0
        %570 = vmatpush1.msra.mxu0 0.0
        %571 = vmatprep.subr.mxu0 0.0
        %572 = vmatpush1.msra.mxu0 0.0
        %573 = vmatprep.subr.mxu0 0.0
        %574 = vmatpush1.msra.mxu0 0.0
        %575 = vmatprep.subr.mxu0 0.0
        %576 = vmatpush1.msra.mxu0 0.0
        %577 = vmatprep.subr.mxu0 0.0
        %578 = vmatpush1.msra.mxu0 0.0
        %579 = vmatprep.subr.mxu0 0.0
        %580 = vmatpush1.msra.mxu0 0.0
        %581 = vmatprep.subr.mxu0 0.0
        %582 = vmatpush1.msra.mxu0 0.0
        %583 = vmatprep.subr.mxu0 0.0
        %584 = vmatpush1.msra.mxu0 0.0
        %585 = vmatprep.subr.mxu0 0.0
        %586 = vmatpush1.msra.mxu0 0.0
        %587 = vmatprep.subr.mxu0 0.0
        %588 = vmatpush1.msra.mxu0 0.0
        %589 = vmatprep.subr.mxu0 0.0
        %590 = vmatpush1.msra.mxu0 0.0
        %591 = vmatprep.subr.mxu0 0.0
        %592 = vmatpush1.msra.mxu0 %v308
        %593 = vmatprep.subr.mxu0 0.0
        %594 = vmatpush1.msra.mxu0 %v307
        %595 = vmatprep.subr.mxu0 0.0
        %596 = vmatpush1.msra.mxu0 %v306
        %597 = vmatprep.subr.mxu0 0.0
        %598 = vmatpush1.msra.mxu0 %v305
        %599 = vmatprep.subr.mxu0 0.0
        %600 = vmatpush2.msra.mxu0 0.0
        %601 = vmatprep.subr.mxu0 0.0
        %602 = vmatpush2.msra.mxu0 0.0
        %603 = vmatprep.subr.mxu0 0.0
        %604 = vmatpush2.msra.mxu0 0.0
        %605 = vmatprep.subr.mxu0 0.0
        %606 = vmatpush2.msra.mxu0 0.0
        %607 = vmatprep.subr.mxu0 0.0
        %608 = vmatpush2.msra.mxu0 0.0
        %609 = vmatprep.subr.mxu0 0.0
        %610 = vmatpush2.msra.mxu0 0.0
        %611 = vmatprep.subr.mxu0 0.0
        %612 = vmatpush2.msra.mxu0 0.0
        %613 = vmatprep.subr.mxu0 0.0
        %614 = vmatpush2.msra.mxu0 0.0
        %615 = vmatprep.subr.mxu0 0.0
        %616 = vmatpush2.msra.mxu0 0.0
        %617 = vmatprep.subr.mxu0 0.0
        %618 = vmatpush2.msra.mxu0 0.0
        %619 = vmatprep.subr.mxu0 0.0
        %620 = vmatpush2.msra.mxu0 0.0
        %621 = vmatprep.subr.mxu0 0.0
        %622 = vmatpush2.msra.mxu0 0.0
        %623 = vmatprep.subr.mxu0 0.0
        %624 = vmatpush2.msra.mxu0 0.0
        %625 = vmatprep.subr.mxu0 0.0
        %626 = vmatpush2.msra.mxu0 0.0
        %627 = vmatprep.subr.mxu0 0.0
        %628 = vmatpush2.msra.mxu0 0.0
        %629 = vmatprep.subr.mxu0 0.0
        %630 = vmatpush2.msra.mxu0 0.0
        %631 = vmatprep.mubr.f32.mxu0 0.0
        %632 = vmatmul.mubr.f32.gmra.mxu0 %v565
        %v633 = vpop.f32.mrf.mxu0
        %v634 = vadd.f32 0.0, %v633
        %v635 = vpop.f32.mrf.mxu0
        %636 = vdwg.mxu0
        %v637 = vadd.f32 %v561, %v634
        %v638 = vxor.u32 %v637, 2147483648
        %v639 = vmul.f32 %v638, 1.442695
        %v640 = vpow.pop %v639
        %v641 = vadd.f32 %v640, 1.0
        %v642 = vrcp.pop %v641
        %v643 = vmul.f32 1.0, %v642
        %v644 = vadd.f32 %v634, %v400
        %646 = vrot.lane.b32.xlu0 %v644, 64
        %v647 = vpop.permute.xlu0 %646
        %v649 = vmul.f32 %v643, %v647
        %651 = vrot.lane.b32.xlu0 %v649, 64
        %v652 = vpop.permute.xlu0 %651
        %v654 = vadd.f32 %v561, %v652
        %v655 = vtanh.pop %v654
        %v656 = vsub.f32 1.0, %v643
        %658 = vrot.lane.b32.xlu0 %v655, 96
        %v659 = vpop.permute.xlu0 %658
        %v661 = vmul.f32 %v656, %v659
        %v662 = vmul.f32 %v643, %v559
        %v663 = vadd.f32 %v661, %v662
        %s664 = sadd.s32 %s315, 2
        %v665 = vstv %s664
        %vm666 = vcmp.lt.s32.totalorder %v665, %v304
        %v667 = vsel %vm666, 1, 0
        %668 = vset.pattern.permute.xlu0 0
        %669 = vperm.xlu0 %668, %v667
        %v670 = vpop.permute.xlu0 %669
        %vm671 = vcmp.eq.s32.totalorder %v670, 1
        %v672 = vsel %vm671, %v663, 0.0
        %674 = vrot.lane.b32.xlu0 %v672, 96
        %v675 = vpop.permute.xlu0 %674
        %s677 = scalar_lea.vmem %s289, 8 [#allocation8]
        %678 = vst.msk [vmem:[%s677] sm:$0xf] %vm437, %v675
        %v679 = vsel %vm671, %v663, %v559
        %s680 = scalar_lea.vmem %s257, 12 [#allocation3]
        %v681 = vld [vmem:[%s680] sm:$0xf]
        %683 = vrot.lane.b32.xlu0 %v679, 96
        %v684 = vpop.permute.xlu0 %683
        %v685 = vsel %vm318, %v684, 0
        %687 = vmatprep.subr.mxu0 0.0
        %688 = vmatpush1.msra.mxu0 0.0
        %689 = vmatprep.subr.mxu0 0.0
        %690 = vmatpush1.msra.mxu0 0.0
        %691 = vmatprep.subr.mxu0 0.0
        %692 = vmatpush1.msra.mxu0 0.0
        %693 = vmatprep.subr.mxu0 0.0
        %694 = vmatpush1.msra.mxu0 0.0
        %695 = vmatprep.subr.mxu0 0.0
        %696 = vmatpush1.msra.mxu0 0.0
        %697 = vmatprep.subr.mxu0 0.0
        %698 = vmatpush1.msra.mxu0 0.0
        %699 = vmatprep.subr.mxu0 0.0
        %700 = vmatpush1.msra.mxu0 0.0
        %701 = vmatprep.subr.mxu0 0.0
        %702 = vmatpush1.msra.mxu0 0.0
        %703 = vmatprep.subr.mxu0 0.0
        %704 = vmatpush1.msra.mxu0 0.0
        %705 = vmatprep.subr.mxu0 0.0
        %706 = vmatpush1.msra.mxu0 0.0
        %707 = vmatprep.subr.mxu0 0.0
        %708 = vmatpush1.msra.mxu0 0.0
        %709 = vmatprep.subr.mxu0 0.0
        %710 = vmatpush1.msra.mxu0 0.0
        %711 = vmatprep.subr.mxu0 0.0
        %712 = vmatpush1.msra.mxu0 %v308
        %713 = vmatprep.subr.mxu0 0.0
        %714 = vmatpush1.msra.mxu0 %v307
        %715 = vmatprep.subr.mxu0 0.0
        %716 = vmatpush1.msra.mxu0 %v306
        %717 = vmatprep.subr.mxu0 0.0
        %718 = vmatpush1.msra.mxu0 %v305
        %719 = vmatprep.subr.mxu0 0.0
        %720 = vmatpush2.msra.mxu0 0.0
        %721 = vmatprep.subr.mxu0 0.0
        %722 = vmatpush2.msra.mxu0 0.0
        %723 = vmatprep.subr.mxu0 0.0
        %724 = vmatpush2.msra.mxu0 0.0
        %725 = vmatprep.subr.mxu0 0.0
        %726 = vmatpush2.msra.mxu0 0.0
        %727 = vmatprep.subr.mxu0 0.0
        %728 = vmatpush2.msra.mxu0 0.0
        %729 = vmatprep.subr.mxu0 0.0
        %730 = vmatpush2.msra.mxu0 0.0
        %731 = vmatprep.subr.mxu0 0.0
        %732 = vmatpush2.msra.mxu0 0.0
        %733 = vmatprep.subr.mxu0 0.0
        %734 = vmatpush2.msra.mxu0 0.0
        %735 = vmatprep.subr.mxu0 0.0
        %736 = vmatpush2.msra.mxu0 0.0
        %737 = vmatprep.subr.mxu0 0.0
        %738 = vmatpush2.msra.mxu0 0.0
        %739 = vmatprep.subr.mxu0 0.0
        %740 = vmatpush2.msra.mxu0 0.0
        %741 = vmatprep.subr.mxu0 0.0
        %742 = vmatpush2.msra.mxu0 0.0
        %743 = vmatprep.subr.mxu0 0.0
        %744 = vmatpush2.msra.mxu0 0.0
        %745 = vmatprep.subr.mxu0 0.0
        %746 = vmatpush2.msra.mxu0 0.0
        %747 = vmatprep.subr.mxu0 0.0
        %748 = vmatpush2.msra.mxu0 0.0
        %749 = vmatprep.subr.mxu0 0.0
        %750 = vmatpush2.msra.mxu0 0.0
        %751 = vmatprep.mubr.f32.mxu0 0.0
        %752 = vmatmul.mubr.f32.gmra.mxu0 %v685
        %v753 = vpop.f32.mrf.mxu0
        %v754 = vadd.f32 0.0, %v753
        %v755 = vpop.f32.mrf.mxu0
        %756 = vdwg.mxu0
        %v757 = vadd.f32 %v681, %v754
        %v758 = vxor.u32 %v757, 2147483648
        %v759 = vmul.f32 %v758, 1.442695
        %v760 = vpow.pop %v759
        %v761 = vadd.f32 %v760, 1.0
        %v762 = vrcp.pop %v761
        %v763 = vmul.f32 1.0, %v762
        %v764 = vadd.f32 %v754, %v400
        %766 = vrot.lane.b32.xlu0 %v764, 64
        %v767 = vpop.permute.xlu0 %766
        %v769 = vmul.f32 %v763, %v767
        %771 = vrot.lane.b32.xlu0 %v769, 64
        %v772 = vpop.permute.xlu0 %771
        %v774 = vadd.f32 %v681, %v772
        %v775 = vtanh.pop %v774
        %v776 = vsub.f32 1.0, %v763
        %778 = vrot.lane.b32.xlu0 %v775, 96
        %v779 = vpop.permute.xlu0 %778
        %v781 = vmul.f32 %v776, %v779
        %v782 = vmul.f32 %v763, %v679
        %v783 = vadd.f32 %v781, %v782
        %s784 = sadd.s32 %s315, 3
        %v785 = vstv %s784
        %vm786 = vcmp.lt.s32.totalorder %v785, %v304
        %v787 = vsel %vm786, 1, 0
        %788 = vset.pattern.permute.xlu0 0
        %789 = vperm.xlu0 %788, %v787
        %v790 = vpop.permute.xlu0 %789
        %vm791 = vcmp.eq.s32.totalorder %v790, 1
        %v792 = vsel %vm791, %v783, 0.0
        %794 = vrot.lane.b32.xlu0 %v792, 96
        %v795 = vpop.permute.xlu0 %794
        %s797 = scalar_lea.vmem %s289, 12 [#allocation8]
        %798 = vst.msk [vmem:[%s797] sm:$0xf] %vm437, %v795
        %v799 = vsel %vm791, %v783, %v679
        %801 = vrot.lane.b32.xlu0 %v799, 96
        %v802 = vpop.permute.xlu0 %801
        %804 = vst.msk [vmem:[#allocation2] sm:$0xf] %vm437, %v802
        %p805 = scmp.eq.s32.totalorder %s30, 2
        // Predicated region
        $region49: #{tpu_custom_call.1} parent=35 // pred_check
          %p806 = pneg %p805
        $region50: #{tpu_custom_call.1} parent=35 // pred_check_branch
          %808 = sbr.rel (%p806) target = $region52
        $region51: #{tpu_custom_call.1} parent=35 // pred_region
          %809 = vst.msk [vmem:[#allocation9] sm:$0xf] %vm437, %v802
        $region52: #{tpu_custom_call.1} parent=35 // pred_fallthru
          _
        %s810 = sand.u32 %s143, 1
        %s811 = scalar_lea.sflag [#allocation5], %s810
        %s812 = sand.u32 %s143, 1
        %s813 = smul.addr %s812, 16
        %s814 = scalar_lea.vmem [#allocation8], %s813
        // Predicated region
        $region53: #{tpu_custom_call.1} parent=35 // pred_check
          %p815 = pneg %p153
        $region54: #{tpu_custom_call.1} parent=35 // pred_check_branch
          %817 = sbr.rel (%p815) target = $region56
        $region55: #{tpu_custom_call.1} parent=35 // pred_region
          %s818 = smul.u32 4, %s30
          %s820 = ssub.s32 256, 256
          %821 = vsyncadd %s811, %s820
          %s822 = sadd.s32 %s29, %s818
          %s823 = smul.addr %s822, 64
          %s824 = scalar_lea.hbm %s4, %s823
          %s825 = sshll.u32 %s814, 4
          %s826 = int_to_ptr.vmem [resolvable:$true] %s825
          %831 = dma.vmem_to_hbm [thread:$0]  %s826, 256, %s824, %s811, 64, 64, 4
        $region56: #{tpu_custom_call.1} parent=35 // pred_fallthru
          _
        // Predicated region
        $region57: #{tpu_custom_call.1} parent=35 // pred_check
          %p832 = pneg %p179
        $region58: #{tpu_custom_call.1} parent=35 // pred_check_branch
          %834 = sbr.rel (%p832) target = $region60
        $region59: #{tpu_custom_call.1} parent=35 // pred_region
          %s836 = ssub.s32 64, 64
          %837 = vsyncadd [#allocation10], %s836
          %s838 = smul.addr %s29, 64
          %s839 = scalar_lea.hbm %s5, %s838
          %s841 = sshll.u32 [#allocation9], 4
          %s842 = int_to_ptr.vmem [resolvable:$true] %s841
          %844 = dma.vmem_to_hbm [thread:$0]  %s842, 64, %s839, [#allocation10]
        $region60: #{tpu_custom_call.1} parent=35 // pred_fallthru
          _
        // Predicated region
        $region61: #{tpu_custom_call.1} parent=35 // pred_check
          %p845 = pneg %p179
        $region62: #{tpu_custom_call.1} parent=35 // pred_check_branch
          %847 = sbr.rel (%p845) target = $region64
        $region63: #{tpu_custom_call.1} parent=35 // pred_region
          %848 = dma.done [#allocation10], 64
        $region64: #{tpu_custom_call.1} parent=35 // pred_fallthru
          _
      $region36: #{tpu_custom_call.1} parent=5 // pred_fallthru
        _
      %p849 = scmp.le.s32.totalorder 2, %s20
      // Predicated region
      $region65: #{tpu_custom_call.1} parent=5 // pred_check
        %p850 = pneg %p849
      $region66: #{tpu_custom_call.1} parent=5 // pred_check_branch
        %852 = sbr.rel (%p850) target = $region68
      $region67: #{tpu_custom_call.1} parent=5 // pred_region
        %s853 = ssub.s32 %s20, 2
        // Predicated region
        $region69: #{tpu_custom_call.1} parent=67 // pred_check
          %p854 = pneg %p159
        $region70: #{tpu_custom_call.1} parent=67 // pred_check_branch
          %856 = sbr.rel (%p854) target = $region72
        $region71: #{tpu_custom_call.1} parent=67 // pred_region
          %s857 = sand.u32 %s144, 1
          %s858 = scalar_lea.sflag [#allocation5], %s857
          %s859 = sand.u32 %s144, 1
          %s860 = smul.addr %s859, 16
          %s861 = scalar_lea.vmem [#allocation8], %s860
          %862 = dma.done %s858, 256
        $region72: #{tpu_custom_call.1} parent=67 // pred_fallthru
          _
      $region68: #{tpu_custom_call.1} parent=5 // pred_fallthru
        _
    $region6: #{tpu_custom_call.1} parent=1 // loop_footer
      %s24 = sadd.s32 1, %s20
    $region7: #{tpu_custom_call.1} parent=1 // loop_footer_branch
      %19 = sbr.rel target = $region3
    $region8: #{tpu_custom_call.1} parent=1 // loop_exit
      _
    %863 = vsyncpa [#allocation4], 1
    %s864 = scalar_lea.sflag [#allocation4], 1
    %865 = vsyncpa %s864, 1
    %866 = vsyncpa [#allocation7], 1
    %867 = vsyncpa [#allocation5], 1
    %s868 = scalar_lea.sflag [#allocation5], 1
    %869 = vsyncpa %s868, 1
    %870 = vsyncpa [#allocation10], 1

</llo_original>
